<compile_context>
chip_gen: v5e
topology: v5e:2x2
jax: 0.10.0
libtpu: 0.0.40
codegen_flags: <defaults>
</compile_context>

<pallas_src>
import functools

import jax
import jax.numpy as jnp
from jax import lax
from jax.experimental import pallas as pl
from jax.experimental.pallas import tpu as pltpu


def _conv1d_block_kernel(prelu_ref, x_ref, w1_ref, g1_ref, b1_ref, wd_ref,
                         g2_ref, b2_ref, wos_ref, out_ref, *,
                         P, dilation, pad, T, mxu_dtype):
    eps = 1e-8                                   # nn.GroupNorm(1, H, eps=1e-8)
    a1 = prelu_ref[0, 0]                         # PReLU slopes (scalars in SMEM)
    a2 = prelu_ref[0, 1]

    m_blk, Bc, Tp = x_ref.shape

    # Weights are already in the MXU dtype (pre-cast in the wrapper).
    w1 = w1_ref[...]                             # (H, Bc) bf16
    wos = wos_ref[...]                           # (Bc+Sc, H) bf16 fused out+skip
    wd = wd_ref[...]                             # (H, P) depthwise taps, f32
    g1, b1 = g1_ref[...], b1_ref[...]
    g2, b2 = g2_ref[...], b2_ref[...]
    H = w1.shape[0]

    # Lane-validity mask (hoisted). Only two uses remain:
    #   * re-zero y's padded tail after GN1 so every depthwise roll wraps
    #     through zeros (the wrapper guarantees T_pad - T >= pad),
    #   * mask z's padded tail out of the GN2 statistics.
    # GN1 stats need no mask: y's tail lanes are exactly zero before GN1.
    if Tp == T:
        valid_t = None
    else:
        t_idx = lax.broadcasted_iota(jnp.int32, (1, Tp), 1)
        valid_t = (t_idx < T).astype(jnp.float32)

    offsets = [p * dilation - pad for p in range(P)]
    inv_n = 1.0 / float(H * T)

    def process_sample(m):
        xs = x_ref[m]                            # (Bc, Tp) f32; tail lanes are 0

        # ---- 1x1 conv (Bc -> H): single MXU matmul, bf16 in / f32 accumulate
        y = jnp.dot(w1, xs.astype(mxu_dtype), preferred_element_type=jnp.float32)
        y = jnp.where(y > 0, y, a1 * y)          # PReLU (keeps tail lanes zero)

        # ---- GroupNorm(1, H): unmasked single-pass stats, fused epilogue ----
        mean = jnp.sum(y) * inv_n
        var = jnp.maximum(jnp.sum(y * y) * inv_n - mean * mean, 0.0)
        sg = lax.rsqrt(var + eps) * g1           # (H, 1) per-channel scale
        y = y * sg + (b1 - mean * sg)
        if valid_t is not None:
            y = y * valid_t                      # re-zero tail before the D-conv

        # ---- depthwise dilated conv: per-tap lane roll, NO tap masks --------
        # (wrap region of every roll lands in the zeroed tail lanes)
        z = None
        for p, off in enumerate(offsets):
            tap = y if off == 0 else pltpu.roll(y, shift=(-off) % Tp, axis=1)
            contrib = wd[:, p:p + 1] * tap
            z = contrib if z is None else z + contrib

        z = jnp.where(z > 0, z, a2 * z)          # PReLU2

        # ---- GroupNorm2: stats masked (z's tail lanes are junk) -------------
        zm = z if valid_t is None else z * valid_t
        mean2 = jnp.sum(zm) * inv_n
        var2 = jnp.maximum(jnp.sum(zm * z) * inv_n - mean2 * mean2, 0.0)
        sg2 = lax.rsqrt(var2 + eps) * g2
        z = z * sg2 + (b2 - mean2 * sg2)

        # ---- fused output/skip 1x1 (H -> Bc+Sc): single MXU matmul ----------
        o = jnp.dot(wos, z.astype(mxu_dtype), preferred_element_type=jnp.float32)
        # Stores are sublane-aligned whenever Bc % 8 == 0 (real configs).
        out_ref[m, :Bc, :] = o[:Bc, :] + xs      # residual on the first Bc rows
        out_ref[m, Bc:, :] = o[Bc:, :]           # skip-connection channels

    if m_blk == 1:
        process_sample(0)
    else:
        # fori_loop (not a static unroll) keeps vreg live ranges / code size
        # bounded when the VMEM heuristic picks a large m_blk.
        def body(m, carry):
            process_sample(m)
            return carry
        lax.fori_loop(0, m_blk, body, 0)


def _tpu_vmem_capacity_bytes():
    """Physical per-core VMEM; conservative fallback if the query fails."""
    try:
        cap = int(pltpu.get_tpu_info().vmem_capacity_bytes)
        if cap > 0:
            return cap
    except Exception:
        pass
    return 64 * 1024 * 1024                      # v7x-sized conservative default


def conv1d_block(x, params, *, P, dilation, m_blk=None, mxu_dtype=jnp.bfloat16):
    """x: [M, B, T] float32. Returns cat([output, skip], axis=1): [M, B+Sc, T]."""
    prelu, w1, g1, b1, wd, g2, b2, wout, wskip = params
    M, Bc, T = x.shape
    H = w1.shape[0]
    Sc = wskip.shape[0]
    assert (P - 1) * dilation % 2 == 0, \
        "non-causal Conv1DBlock needs even (P-1)*dilation so the D-conv keeps length T"
    pad = (P - 1) * dilation // 2                # non-causal padding

    # Pad time so (a) lanes are dense and (b) the wrap region of every
    # depthwise roll lands in the zeroed tail (=> no per-tap masks in-kernel).
    T_pad = ((T + pad + 127) // 128) * 128
    assert T_pad % 128 == 0 and T_pad - T >= pad, "roll-wrap safety margin violated"

    # ---- generation-aware VMEM budget / tile sizing -------------------------
    vmem_cap = _tpu_vmem_capacity_bytes()
    # ~100 MiB on 128 MiB parts (v5e/v6e), ~48 MiB on 64 MiB parts (v7x).
    vmem_limit = int(max(min(vmem_cap - (16 << 20), 100 << 20), 32 << 20))
    # Grid-invariant params are double-buffered by the pipeline (bf16 matmul
    # weights + f32 depthwise/GN params); account for them in the budget.
    param_bytes = 2 * (2 * H * Bc + 2 * (Bc + Sc) * H + 4 * H * P + 16 * H)
    # Per-sample working set: double-buffered x/out blocks + ~4 (H,T_pad) temps.
    per_sample = 4 * T_pad * (2 * Bc + 2 * (Bc + Sc) + 4 * H)
    budget = max(vmem_limit - param_bytes - (8 << 20), 4 << 20)
    cap = max(1, budget // per_sample)

    if m_blk is None:
        divisors = [d for d in range(1, M + 1) if M % d == 0 and d <= cap]

        def pick(min_steps, even=False):
            ok = [d for d in divisors
                  if M // d >= min_steps and (not even or (M // d) % 2 == 0)]
            return max(ok) if ok else None

        # Prefer >= 4 even grid steps (v7x: 2 TCs x >= 2 pipelined steps each),
        # then >= 2 steps (single-TC v5e/v6e), then whatever fits.
        m_blk = (pick(4, even=True) or pick(4) or pick(2)
                 or (max(divisors) if divisors else 1))
    assert M % m_blk == 0, "m_blk must divide the batch size"
    # NOTE: prime/awkward M falls back to m_blk=1 (still correct; grid-step
    # overhead is ~0.35us per sample, negligible vs. the per-sample work).

    # Pad time with zeros in the wrapper (lane-dense blocks, unmasked stores).
    xp = x if T_pad == T else jnp.pad(x, ((0, 0), (0, 0), (0, T_pad - T)))
    # Fused out/skip weight; pre-cast matmul weights to the MXU dtype (halves
    # weight DMA/VMEM and removes per-grid-step in-kernel casts).
    w1_c = w1.astype(mxu_dtype)
    wos_c = jnp.concatenate([wout, wskip], axis=0).astype(mxu_dtype)

    kernel = functools.partial(_conv1d_block_kernel, P=P, dilation=dilation,
                               pad=pad, T=T, mxu_dtype=mxu_dtype)

    grid_spec = pltpu.PrefetchScalarGridSpec(
        num_scalar_prefetch=0,
        grid=(M // m_blk,),
        in_specs=[
            pl.BlockSpec((1, 2), lambda i: (0, 0),
                         memory_space=pltpu.MemorySpace.SMEM),       # PReLU slopes
            pl.BlockSpec((m_blk, Bc, T_pad), lambda i: (i, 0, 0)),   # x block
            pl.BlockSpec((H, Bc), lambda i: (0, 0)),                 # 1x1 conv weight (bf16)
            pl.BlockSpec((H, 1), lambda i: (0, 0)),                  # GN1 gamma
            pl.BlockSpec((H, 1), lambda i: (0, 0)),                  # GN1 beta
            pl.BlockSpec((H, P), lambda i: (0, 0)),                  # depthwise weight
            pl.BlockSpec((H, 1), lambda i: (0, 0)),                  # GN2 gamma
            pl.BlockSpec((H, 1), lambda i: (0, 0)),                  # GN2 beta
            pl.BlockSpec((Bc + Sc, H), lambda i: (0, 0)),            # fused out/skip weight (bf16)
        ],
        out_specs=pl.BlockSpec((m_blk, Bc + Sc, T_pad), lambda i: (i, 0, 0)),
    )

    out = pl.pallas_call(
        kernel,
        out_shape=jax.ShapeDtypeStruct((M, Bc + Sc, T_pad), jnp.float32),
        grid_spec=grid_spec,
        compiler_params=pltpu.CompilerParams(
            dimension_semantics=("parallel",),
            vmem_limit_bytes=vmem_limit),
    )(prelu, xp, w1_c, g1, b1, wd, g2, b2, wos_c)

    return out if T_pad == T else out[:, :, :T]


def conv1d_block_reference(x, params, *, P, dilation, dot_dtype=jnp.float32):
    """Pure-JAX reference matching the PyTorch forward (non-causal, B-channel input).

    dot_dtype=jnp.bfloat16 mirrors the kernel's MXU input dtype (f32 accumulate).
    """
    prelu, w1, g1, b1, wd, g2, b2, wout, wskip = params
    M, Bc, T = x.shape
    pad = (P - 1) * dilation // 2
    a1, a2 = prelu[0, 0], prelu[0, 1]
    eps = 1e-8

    def dot3(w, v, eq):
        return jnp.einsum(eq, w.astype(dot_dtype), v.astype(dot_dtype),
                          preferred_element_type=jnp.float32,
                          precision=lax.Precision.HIGHEST)

    y = dot3(w1, x, 'hb,mbt->mht')
    y = jnp.where(y > 0, y, a1 * y)
    mean = y.mean(axis=(1, 2), keepdims=True)
    var = ((y - mean) ** 2).mean(axis=(1, 2), keepdims=True)
    y = (y - mean) / jnp.sqrt(var + eps) * g1[None] + b1[None]

    ypad = jnp.pad(y, ((0, 0), (0, 0), (pad, pad)))
    z = jnp.zeros_like(y)
    for p in range(P):
        z = z + wd[None, :, p:p + 1] * ypad[:, :, p * dilation:p * dilation + T]

    z = jnp.where(z > 0, z, a2 * z)
    mean2 = z.mean(axis=(1, 2), keepdims=True)
    var2 = ((z - mean2) ** 2).mean(axis=(1, 2), keepdims=True)
    z = (z - mean2) / jnp.sqrt(var2 + eps) * g2[None] + b2[None]

    out = dot3(wout, z, 'bh,mht->mbt') + x
    skip = dot3(wskip, z, 'sh,mht->mst')
    return jnp.concatenate([out, skip], axis=1)


def make_params(key, B, Sc, H, P):
    """Deterministic synthetic parameters (shapes from Conv1DBlock.__init__)."""
    ks = jax.random.split(key, 4)
    prelu = jnp.full((1, 2), 0.25, jnp.float32)                   # PReLU, PReLU2
    w1 = 0.1 * jax.random.normal(ks[0], (H, B), jnp.float32)      # Conv1d(B,H,1)
    g1 = jnp.ones((H, 1), jnp.float32)                            # GroupNorm weight
    b1 = jnp.zeros((H, 1), jnp.float32)                           # GroupNorm bias
    wd = 0.1 * jax.random.normal(ks[1], (H, P), jnp.float32)      # depthwise Conv1d
    g2 = jnp.ones((H, 1), jnp.float32)
    b2 = jnp.zeros((H, 1), jnp.float32)
    wout = 0.1 * jax.random.normal(ks[2], (B, H), jnp.float32)    # Conv1d(H,B,1)
    wskip = 0.1 * jax.random.normal(ks[3], (Sc, H), jnp.float32)  # Conv1d(H,Sc,1)
    return (prelu, w1, g1, b1, wd, g2, b2, wout, wskip)


if __name__ == "__main__":
    # Small but sublane-aligned channel counts (B, Sc multiples of 8 keep the
    # residual/skip stores dense, as in real Conv-TasNet configs B=Sc=128).
    B, Sc, H, P, dilation, T = 8, 8, 32, 3, 2, 16

    key = jax.random.PRNGKey(0)
    kx1, kx2, kp = jax.random.split(key, 3)
    params = make_params(kp, B, Sc, H, P)

    def check(x, out):
        # Strict check against a reference that mirrors the kernel's bf16 MXU inputs.
        ref_bf16 = conv1d_block_reference(x, params, P=P, dilation=dilation,
                                          dot_dtype=jnp.bfloat16)
        assert out.shape == ref_bf16.shape
        assert bool(jnp.allclose(out, ref_bf16, rtol=5e-3, atol=5e-3)), \
            "mismatch vs bf16-matched reference"
        # Loose sanity check against the pure-f32 module semantics.
        ref_f32 = conv1d_block_reference(x, params, P=P, dilation=dilation,
                                         dot_dtype=jnp.float32)
        assert bool(jnp.allclose(out, ref_f32, rtol=1e-1, atol=1e-1)), \
            "mismatch vs f32 reference"

    # 1) Default tiling (auto m_blk -> 1 sample per grid step, inlined path).
    x1 = jax.random.normal(kx1, (2, B, T), jnp.float32)
    out1 = jax.block_until_ready(conv1d_block(x1, params, P=P, dilation=dilation))
    assert out1.shape == (2, B + Sc, T)
    check(x1, out1)

    # 2) Multi-sample blocks (exercises the in-kernel fori_loop path).
    x2 = jax.random.normal(kx2, (4, B, T), jnp.float32)
    out2 = jax.block_until_ready(
        conv1d_block(x2, params, P=P, dilation=dilation, m_blk=2))
    assert out2.shape == (4, B + Sc, T)
    check(x2, out2)

    print("KERNEL_OK")
</pallas_src>

<mosaic_0001>
module attributes {stable_mosaic.version = 11 : i64} {
  func.func @_conv1d_block_kernel(%arg0: i32, %arg1: memref<1x2xf32, #tpu.memory_space<smem>>, %arg2: memref<1x8x128xf32, #tpu.memory_space<vmem>>, %arg3: memref<32x8xbf16, #tpu.memory_space<vmem>>, %arg4: memref<32x1xf32, #tpu.memory_space<vmem>>, %arg5: memref<32x1xf32, #tpu.memory_space<vmem>>, %arg6: memref<32x3xf32, #tpu.memory_space<vmem>>, %arg7: memref<32x1xf32, #tpu.memory_space<vmem>>, %arg8: memref<32x1xf32, #tpu.memory_space<vmem>>, %arg9: memref<16x32xbf16, #tpu.memory_space<vmem>>, %arg10: memref<1x16x128xf32, #tpu.memory_space<vmem>>) attributes {dimension_semantics = [#tpu.dimension_semantics<parallel>], iteration_bounds = array<i64: 2>, scalar_prefetch = 0 : i64, scratch_operands = 0 : i64, tpu.core_type = #tpu.core_type<tc>, window_params = [{transform_indices = @transform_0, window_bounds = array<i64: 1, 2>}, {transform_indices = @transform_1, window_bounds = array<i64: 1, 8, 128>}, {pipeline_mode = #tpu.pipeline_mode<synchronous>, transform_indices = @transform_2, window_bounds = array<i64: 32, 8>}, {pipeline_mode = #tpu.pipeline_mode<synchronous>, transform_indices = @transform_3, window_bounds = array<i64: 32, 1>}, {pipeline_mode = #tpu.pipeline_mode<synchronous>, transform_indices = @transform_4, window_bounds = array<i64: 32, 1>}, {pipeline_mode = #tpu.pipeline_mode<synchronous>, transform_indices = @transform_5, window_bounds = array<i64: 32, 3>}, {pipeline_mode = #tpu.pipeline_mode<synchronous>, transform_indices = @transform_6, window_bounds = array<i64: 32, 1>}, {pipeline_mode = #tpu.pipeline_mode<synchronous>, transform_indices = @transform_7, window_bounds = array<i64: 32, 1>}, {pipeline_mode = #tpu.pipeline_mode<synchronous>, transform_indices = @transform_8, window_bounds = array<i64: 16, 32>}, {transform_indices = @transform_9, window_bounds = array<i64: 1, 16, 128>}]} {
    %c0 = arith.constant 0 : index
    %c0_0 = arith.constant 0 : index
    %0 = memref.load %arg1[%c0, %c0_0] : memref<1x2xf32, #tpu.memory_space<smem>>
    %c0_1 = arith.constant 0 : index
    %c1 = arith.constant 1 : index
    %1 = memref.load %arg1[%c0_1, %c1] : memref<1x2xf32, #tpu.memory_space<smem>>
    %c0_2 = arith.constant 0 : index
    %c0_3 = arith.constant 0 : index
    %2 = vector.load %arg3[%c0_2, %c0_3] : memref<32x8xbf16, #tpu.memory_space<vmem>>, vector<32x8xbf16>
    %c0_4 = arith.constant 0 : index
    %c0_5 = arith.constant 0 : index
    %3 = vector.load %arg9[%c0_4, %c0_5] : memref<16x32xbf16, #tpu.memory_space<vmem>>, vector<16x32xbf16>
    %c0_6 = arith.constant 0 : index
    %c0_7 = arith.constant 0 : index
    %4 = vector.load %arg6[%c0_6, %c0_7] : memref<32x3xf32, #tpu.memory_space<vmem>>, vector<32x3xf32>
    %c0_8 = arith.constant 0 : index
    %c0_9 = arith.constant 0 : index
    %5 = vector.load %arg4[%c0_8, %c0_9] : memref<32x1xf32, #tpu.memory_space<vmem>>, vector<32x1xf32>
    %c0_10 = arith.constant 0 : index
    %c0_11 = arith.constant 0 : index
    %6 = vector.load %arg5[%c0_10, %c0_11] : memref<32x1xf32, #tpu.memory_space<vmem>>, vector<32x1xf32>
    %c0_12 = arith.constant 0 : index
    %c0_13 = arith.constant 0 : index
    %7 = vector.load %arg7[%c0_12, %c0_13] : memref<32x1xf32, #tpu.memory_space<vmem>>, vector<32x1xf32>
    %c0_14 = arith.constant 0 : index
    %c0_15 = arith.constant 0 : index
    %8 = vector.load %arg8[%c0_14, %c0_15] : memref<32x1xf32, #tpu.memory_space<vmem>>, vector<32x1xf32>
    %9 = tpu.iota {dimensions = array<i32: 1>} : vector<1x128xi32>
    %c16_i32 = arith.constant 16 : i32
    %10 = vector.broadcast %c16_i32 : i32 to vector<1x128xi32>
    %11 = arith.cmpi slt, %9, %10 : vector<1x128xi32>
    %12 = arith.extui %11 : vector<1x128xi1> to vector<1x128xi32>
    %13 = arith.sitofp %12 : vector<1x128xi32> to vector<1x128xf32>
    %c0_16 = arith.constant 0 : index
    %c0_17 = arith.constant 0 : index
    %c0_18 = arith.constant 0 : index
    %14 = vector.load %arg2[%c0_16, %c0_17, %c0_18] : memref<1x8x128xf32, #tpu.memory_space<vmem>>, vector<1x8x128xf32>
    %15 = vector.shape_cast %14 : vector<1x8x128xf32> to vector<8x128xf32>
    %16 = arith.truncf %15 : vector<8x128xf32> to vector<8x128xbf16>
    %cst = arith.constant dense<0.000000e+00> : vector<32x128xf32>
    %17 = tpu.matmul %2, %16, %cst {dimension_numbers = #tpu.dot_dimension_numbers<[1], [0], [0], [1], [0, 0, 1, 1], [], []>} : vector<32x8xbf16>, vector<8x128xbf16>, vector<32x128xf32> -> vector<32x128xf32>
    %cst_19 = arith.constant 0.000000e+00 : f32
    %18 = vector.broadcast %cst_19 : f32 to vector<32x128xf32>
    %19 = arith.cmpf ogt, %17, %18 : vector<32x128xf32>
    %20 = vector.broadcast %0 : f32 to vector<32x128xf32>
    %21 = arith.mulf %20, %17 : vector<32x128xf32>
    %22 = arith.select %19, %17, %21 : vector<32x128xi1>, vector<32x128xf32>
    %23 = vector.shape_cast %22 : vector<32x128xf32> to vector<1x32x128xf32>
    %cst_20 = arith.constant dense<0.000000e+00> : vector<1xf32>
    %24 = vector.multi_reduction <add>, %23, %cst_20 [1, 2] : vector<1x32x128xf32> to vector<1xf32>
    %25 = vector.shape_cast %24 : vector<1xf32> to vector<1x1x1xf32>
    %26 = vector.extract %25[0, 0, 0] : f32 from vector<1x1x1xf32>
    %cst_21 = arith.constant 0.001953125 : f32
    %27 = arith.mulf %26, %cst_21 : f32
    %28 = arith.mulf %22, %22 : vector<32x128xf32>
    %29 = vector.shape_cast %28 : vector<32x128xf32> to vector<1x32x128xf32>
    %cst_22 = arith.constant dense<0.000000e+00> : vector<1xf32>
    %30 = vector.multi_reduction <add>, %29, %cst_22 [1, 2] : vector<1x32x128xf32> to vector<1xf32>
    %31 = vector.shape_cast %30 : vector<1xf32> to vector<1x1x1xf32>
    %32 = vector.extract %31[0, 0, 0] : f32 from vector<1x1x1xf32>
    %cst_23 = arith.constant 0.001953125 : f32
    %33 = arith.mulf %32, %cst_23 : f32
    %34 = arith.mulf %27, %27 : f32
    %35 = arith.subf %33, %34 : f32
    %cst_24 = arith.constant 0.000000e+00 : f32
    %36 = arith.maximumf %35, %cst_24 : f32
    %cst_25 = arith.constant 9.99999993E-9 : f32
    %37 = arith.addf %36, %cst_25 : f32
    %38 = math.rsqrt %37 : f32
    %39 = vector.broadcast %38 : f32 to vector<32x1xf32>
    %40 = arith.mulf %39, %5 : vector<32x1xf32>
    %41 = vector.broadcast %40 : vector<32x1xf32> to vector<32x128xf32>
    %42 = arith.mulf %22, %41 : vector<32x128xf32>
    %43 = vector.broadcast %27 : f32 to vector<32x1xf32>
    %44 = arith.mulf %43, %40 : vector<32x1xf32>
    %45 = arith.subf %6, %44 : vector<32x1xf32>
    %46 = vector.broadcast %45 : vector<32x1xf32> to vector<32x128xf32>
    %47 = arith.addf %42, %46 : vector<32x128xf32>
    %48 = vector.broadcast %13 : vector<1x128xf32> to vector<32x128xf32>
    %49 = arith.mulf %47, %48 : vector<32x128xf32>
    %c2_i32 = arith.constant 2 : i32
    %50 = tpu.dynamic_rotate %49 by %c2_i32 dim 1 : vector<32x128xf32>, i32 -> vector<32x128xf32>
    %51 = vector.extract_strided_slice %4 {offsets = [0, 0], sizes = [32, 1], strides = [1, 1]} : vector<32x3xf32> to vector<32x1xf32>
    %52 = vector.broadcast %51 : vector<32x1xf32> to vector<32x128xf32>
    %53 = arith.mulf %52, %50 : vector<32x128xf32>
    %54 = vector.extract_strided_slice %4 {offsets = [0, 1], sizes = [32, 1], strides = [1, 1]} : vector<32x3xf32> to vector<32x1xf32>
    %55 = vector.broadcast %54 : vector<32x1xf32> to vector<32x128xf32>
    %56 = arith.mulf %55, %49 : vector<32x128xf32>
    %57 = arith.addf %53, %56 : vector<32x128xf32>
    %c126_i32 = arith.constant 126 : i32
    %58 = tpu.dynamic_rotate %49 by %c126_i32 dim 1 : vector<32x128xf32>, i32 -> vector<32x128xf32>
    %59 = vector.extract_strided_slice %4 {offsets = [0, 2], sizes = [32, 1], strides = [1, 1]} : vector<32x3xf32> to vector<32x1xf32>
    %60 = vector.broadcast %59 : vector<32x1xf32> to vector<32x128xf32>
    %61 = arith.mulf %60, %58 : vector<32x128xf32>
    %62 = arith.addf %57, %61 : vector<32x128xf32>
    %cst_26 = arith.constant 0.000000e+00 : f32
    %63 = vector.broadcast %cst_26 : f32 to vector<32x128xf32>
    %64 = arith.cmpf ogt, %62, %63 : vector<32x128xf32>
    %65 = vector.broadcast %1 : f32 to vector<32x128xf32>
    %66 = arith.mulf %65, %62 : vector<32x128xf32>
    %67 = arith.select %64, %62, %66 : vector<32x128xi1>, vector<32x128xf32>
    %68 = vector.broadcast %13 : vector<1x128xf32> to vector<32x128xf32>
    %69 = arith.mulf %67, %68 : vector<32x128xf32>
    %70 = vector.shape_cast %69 : vector<32x128xf32> to vector<1x32x128xf32>
    %cst_27 = arith.constant dense<0.000000e+00> : vector<1xf32>
    %71 = vector.multi_reduction <add>, %70, %cst_27 [1, 2] : vector<1x32x128xf32> to vector<1xf32>
    %72 = vector.shape_cast %71 : vector<1xf32> to vector<1x1x1xf32>
    %73 = vector.extract %72[0, 0, 0] : f32 from vector<1x1x1xf32>
    %cst_28 = arith.constant 0.001953125 : f32
    %74 = arith.mulf %73, %cst_28 : f32
    %75 = arith.mulf %69, %67 : vector<32x128xf32>
    %76 = vector.shape_cast %75 : vector<32x128xf32> to vector<1x32x128xf32>
    %cst_29 = arith.constant dense<0.000000e+00> : vector<1xf32>
    %77 = vector.multi_reduction <add>, %76, %cst_29 [1, 2] : vector<1x32x128xf32> to vector<1xf32>
    %78 = vector.shape_cast %77 : vector<1xf32> to vector<1x1x1xf32>
    %79 = vector.extract %78[0, 0, 0] : f32 from vector<1x1x1xf32>
    %cst_30 = arith.constant 0.001953125 : f32
    %80 = arith.mulf %79, %cst_30 : f32
    %81 = arith.mulf %74, %74 : f32
    %82 = arith.subf %80, %81 : f32
    %cst_31 = arith.constant 0.000000e+00 : f32
    %83 = arith.maximumf %82, %cst_31 : f32
    %cst_32 = arith.constant 9.99999993E-9 : f32
    %84 = arith.addf %83, %cst_32 : f32
    %85 = math.rsqrt %84 : f32
    %86 = vector.broadcast %85 : f32 to vector<32x1xf32>
    %87 = arith.mulf %86, %7 : vector<32x1xf32>
    %88 = vector.broadcast %87 : vector<32x1xf32> to vector<32x128xf32>
    %89 = arith.mulf %67, %88 : vector<32x128xf32>
    %90 = vector.broadcast %74 : f32 to vector<32x1xf32>
    %91 = arith.mulf %90, %87 : vector<32x1xf32>
    %92 = arith.subf %8, %91 : vector<32x1xf32>
    %93 = vector.broadcast %92 : vector<32x1xf32> to vector<32x128xf32>
    %94 = arith.addf %89, %93 : vector<32x128xf32>
    %95 = arith.truncf %94 : vector<32x128xf32> to vector<32x128xbf16>
    %cst_33 = arith.constant dense<0.000000e+00> : vector<16x128xf32>
    %96 = tpu.matmul %3, %95, %cst_33 {dimension_numbers = #tpu.dot_dimension_numbers<[1], [0], [0], [1], [0, 0, 1, 1], [], []>} : vector<16x32xbf16>, vector<32x128xbf16>, vector<16x128xf32> -> vector<16x128xf32>
    %97 = vector.extract_strided_slice %96 {offsets = [0, 0], sizes = [8, 128], strides = [1, 1]} : vector<16x128xf32> to vector<8x128xf32>
    %98 = arith.addf %97, %15 : vector<8x128xf32>
    %c0_34 = arith.constant 0 : index
    %c0_35 = arith.constant 0 : index
    %c0_36 = arith.constant 0 : index
    %99 = vector.load %arg10[%c0_34, %c0_35, %c0_36] : memref<1x16x128xf32, #tpu.memory_space<vmem>>, vector<1x8x128xf32>
    %100 = vector.shape_cast %99 : vector<1x8x128xf32> to vector<8x128xf32>
    %101 = vector.shape_cast %98 : vector<8x128xf32> to vector<1x8x128xf32>
    tpu.vector_store %arg10[%c0_34, %c0_35, %c0_36], %101 {strides = array<i32>} : memref<1x16x128xf32, #tpu.memory_space<vmem>>, vector<1x8x128xf32>,
    %102 = vector.extract_strided_slice %96 {offsets = [8, 0], sizes = [8, 128], strides = [1, 1]} : vector<16x128xf32> to vector<8x128xf32>
    %c0_37 = arith.constant 0 : index
    %c8 = arith.constant 8 : index
    %c0_38 = arith.constant 0 : index
    %103 = vector.load %arg10[%c0_37, %c8, %c0_38] : memref<1x16x128xf32, #tpu.memory_space<vmem>>, vector<1x8x128xf32>
    %104 = vector.shape_cast %103 : vector<1x8x128xf32> to vector<8x128xf32>
    %105 = vector.shape_cast %102 : vector<8x128xf32> to vector<1x8x128xf32>
    tpu.vector_store %arg10[%c0_37, %c8, %c0_38], %105 {strides = array<i32>} : memref<1x16x128xf32, #tpu.memory_space<vmem>>, vector<1x8x128xf32>,
    return
  }
  func.func @transform_0(%arg0: i32) -> (i32, i32) {
    %c0_i32 = arith.constant 0 : i32
    %c0_i32_0 = arith.constant 0 : i32
    %c0_i32_1 = arith.constant 0 : i32
    return %c0_i32, %c0_i32_0 : i32, i32
  }
  func.func @transform_1(%arg0: i32) -> (i32, i32, i32) {
    %c0_i32 = arith.constant 0 : i32
    %c0_i32_0 = arith.constant 0 : i32
    %c0_i32_1 = arith.constant 0 : i32
    return %arg0, %c0_i32, %c0_i32_0 : i32, i32, i32
  }
  func.func @transform_2(%arg0: i32) -> (i32, i32) {
    %c0_i32 = arith.constant 0 : i32
    %c0_i32_0 = arith.constant 0 : i32
    %c0_i32_1 = arith.constant 0 : i32
    return %c0_i32, %c0_i32_0 : i32, i32
  }
  func.func @transform_3(%arg0: i32) -> (i32, i32) {
    %c0_i32 = arith.constant 0 : i32
    %c0_i32_0 = arith.constant 0 : i32
    %c0_i32_1 = arith.constant 0 : i32
    return %c0_i32, %c0_i32_0 : i32, i32
  }
  func.func @transform_4(%arg0: i32) -> (i32, i32) {
    %c0_i32 = arith.constant 0 : i32
    %c0_i32_0 = arith.constant 0 : i32
    %c0_i32_1 = arith.constant 0 : i32
    return %c0_i32, %c0_i32_0 : i32, i32
  }
  func.func @transform_5(%arg0: i32) -> (i32, i32) {
    %c0_i32 = arith.constant 0 : i32
    %c0_i32_0 = arith.constant 0 : i32
    %c0_i32_1 = arith.constant 0 : i32
    return %c0_i32, %c0_i32_0 : i32, i32
  }
  func.func @transform_6(%arg0: i32) -> (i32, i32) {
    %c0_i32 = arith.constant 0 : i32
    %c0_i32_0 = arith.constant 0 : i32
    %c0_i32_1 = arith.constant 0 : i32
    return %c0_i32, %c0_i32_0 : i32, i32
  }
  func.func @transform_7(%arg0: i32) -> (i32, i32) {
    %c0_i32 = arith.constant 0 : i32
    %c0_i32_0 = arith.constant 0 : i32
    %c0_i32_1 = arith.constant 0 : i32
    return %c0_i32, %c0_i32_0 : i32, i32
  }
  func.func @transform_8(%arg0: i32) -> (i32, i32) {
    %c0_i32 = arith.constant 0 : i32
    %c0_i32_0 = arith.constant 0 : i32
    %c0_i32_1 = arith.constant 0 : i32
    return %c0_i32, %c0_i32_0 : i32, i32
  }
  func.func @transform_9(%arg0: i32) -> (i32, i32, i32) {
    %c0_i32 = arith.constant 0 : i32
    %c0_i32_0 = arith.constant 0 : i32
    %c0_i32_1 = arith.constant 0 : i32
    return %arg0, %c0_i32, %c0_i32_0 : i32, i32, i32
  }
}

</mosaic_0001>

<llo_original>
// kernel: tpu_custom_call.1
$region0: #{tpu_custom_call.1}
  #allocation0 [shape = 'u32[]', space=smem, size = 0x4, offset = 0x4, fixed_abs, tag = 'smem constant byte address 0x4 - core index']
  #allocation1 [shape = 'u32[72,128]{1,0:T(1,128)}', space=vmem, size = 0x9000, scoped, tag = 'internal scratch']
  %s0 = inlined_call_operand.vmem [shape: f32[1,2], index: 0, kind: input, shape index: {}]
  %s1 = inlined_call_operand.vmem [shape: f32[2,8,128], index: 1, kind: input, shape index: {}]
  %s2 = inlined_call_operand.vmem [shape: bf16[32,8], index: 2, kind: input, shape index: {}]
  %s3 = inlined_call_operand.vmem [shape: f32[32,1], index: 3, kind: input, shape index: {}]
  %s4 = inlined_call_operand.vmem [shape: f32[32,1], index: 4, kind: input, shape index: {}]
  %s5 = inlined_call_operand.vmem [shape: f32[32,3], index: 5, kind: input, shape index: {}]
  %s6 = inlined_call_operand.vmem [shape: f32[32,1], index: 6, kind: input, shape index: {}]
  %s7 = inlined_call_operand.vmem [shape: f32[32,1], index: 7, kind: input, shape index: {}]
  %s8 = inlined_call_operand.vmem [shape: bf16[16,32], index: 8, kind: input, shape index: {}]
  %s9 = inlined_call_operand.hbm [shape: f32[2,16,128], index: 9, kind: output, shape index: {}]
  %s10 = sld [smem:[#allocation0]]
  $region73: #{tpu_custom_call.1} parent=0
    _
  %s12 = ssub.s32 1, %s10
  %s13 = scalar_select 0, %s12, %s10
  $region1: #{tpu_custom_call.1} parent=0
    #allocation2 [shape = 'u8[512]{0}', space=smem, size = 0x200, scoped, tag = 'input window, operand 0, single buffered']
    #allocation3 [shape = 's32[2]{0}', space=sflag, size = 0x8, scoped, tag = 'scoped memory for tpu_custom_call.1']
    #allocation4 [shape = 's32[2]{0}', space=sflag, size = 0x8, scoped, tag = 'scoped memory for tpu_custom_call.1']
    #allocation5 [shape = 'u8[16384]{0}', space=vmem, size = 0x4000, scoped, tag = 'output window, operand 0']
    %14 = vsyncpa [#allocation4], 0
    %15 = vsyncpa [#allocation3], 0
    %s16 = scalar_lea.sflag [#allocation3], 1
    %17 = vsyncpa %s16, 0
    loop: start=0, step=1, limit=4
    $region2: #{tpu_custom_call.1} parent=1 // loop_pre_header
      _
    $region3: #{tpu_custom_call.1} parent=1 // loop_header
      %s19 = sphi 0, %s23
      %p20 = scmp.ge.s32.totalorder %s19, 4
      %s27 = sphi 0, %s27
      %s29 = sphi 0, %s27
      %s30 = sphi 0, %s29
      %s44 = sphi 0, %s30
      %s50 = sphi 0, %s52
      %s53 = sphi 0, %s50
      %s54 = sphi 0, %s53
      %s70 = sphi 0, %s54
      %s74 = sphi 0, %s74
      %s76 = sphi 0, %s74
      %s77 = sphi 0, %s76
      %s91 = sphi 0, %s77
      %s95 = sphi 0, %s95
      %s97 = sphi 0, %s95
      %s98 = sphi 0, %s97
      %s112 = sphi 0, %s98
      %s116 = sphi 0, %s116
      %s118 = sphi 0, %s116
      %s119 = sphi 0, %s118
      %s133 = sphi 0, %s119
      %s137 = sphi 0, %s137
      %s139 = sphi 0, %s137
      %s140 = sphi 0, %s139
      %s154 = sphi 0, %s140
      %s158 = sphi 0, %s158
      %s160 = sphi 0, %s158
      %s161 = sphi 0, %s160
      %s175 = sphi 0, %s161
      %s179 = sphi 0, %s179
      %s181 = sphi 0, %s179
      %s182 = sphi 0, %s181
      %s196 = sphi 0, %s182
      %s200 = sphi 0, %s200
      %s202 = sphi 0, %s200
      %s203 = sphi 0, %s202
      %s217 = sphi 0, %s203
      %s223 = sphi 0, %s225
      %s226 = sphi 0, %s223
      %s227 = sphi 0, %s226
      %s243 = sphi 0, %s227
    $region4: #{tpu_custom_call.1} parent=1 // loop_header_branch
      %22 = sbr.rel (%p20) target = $region8
    $region5: #{tpu_custom_call.1} parent=1 // loop_body
      %s24 = ssub.s32 %s19, 1
      %s25 = ssub.s32 %s19, 2
      %s26 = sadd.s32 %s19, 1
      %s28 = sadd.s32 %s27, 1
      %p31 = scmp.eq.s32.totalorder %s19, 1
      %p32 = scmp.ne.s32.totalorder %s27, %s29
      %p33 = scmp.eq.s32.totalorder %s19, 0
      %p34 = por %p32, %p33
      %p35 = scmp.ne.s32.totalorder %s27, %s29
      %p36 = scmp.eq.s32.totalorder %s24, 1
      %p37 = por %p35, %p36
      %p38 = scmp.ne.s32.totalorder %s29, %s30
      %p39 = scmp.eq.s32.totalorder %s24, 0
      %p40 = por %p38, %p39
      %p41 = scmp.ne.s32.totalorder %s29, %s30
      %p42 = scmp.eq.s32.totalorder %s25, 1
      %p43 = por %p41, %p42
      %p45 = scmp.ne.s32.totalorder %s30, %s44
      %p46 = scmp.eq.s32.totalorder %s25, 0
      %p47 = por %p45, %p46
      %s48 = ssub.s32 %s19, %s26
      %p49 = scmp.eq.s32.totalorder %s48, 0
      %s51 = sadd.s32 %s50, 1
      %s52 = scalar_select %p49, %s50, %s51
      %p55 = pneg %p49
      %p56 = scmp.eq.s32.totalorder %s19, 1
      %p57 = por %p55, %p56
      %p58 = scmp.ne.s32.totalorder %s50, %s53
      %p59 = scmp.eq.s32.totalorder %s19, 0
      %p60 = por %p58, %p59
      %p61 = scmp.ne.s32.totalorder %s50, %s53
      %p62 = scmp.eq.s32.totalorder %s24, 1
      %p63 = por %p61, %p62
      %p64 = scmp.ne.s32.totalorder %s53, %s54
      %p65 = scmp.eq.s32.totalorder %s24, 0
      %p66 = por %p64, %p65
      %p67 = scmp.ne.s32.totalorder %s53, %s54
      %p68 = scmp.eq.s32.totalorder %s25, 1
      %p69 = por %p67, %p68
      %p71 = scmp.ne.s32.totalorder %s54, %s70
      %p72 = scmp.eq.s32.totalorder %s25, 0
      %p73 = por %p71, %p72
      %s75 = sadd.s32 %s74, 1
      %p78 = scmp.eq.s32.totalorder %s19, 1
      %p79 = scmp.ne.s32.totalorder %s74, %s76
      %p80 = scmp.eq.s32.totalorder %s19, 0
      %p81 = por %p79, %p80
      %p82 = scmp.ne.s32.totalorder %s74, %s76
      %p83 = scmp.eq.s32.totalorder %s24, 1
      %p84 = por %p82, %p83
      %p85 = scmp.ne.s32.totalorder %s76, %s77
      %p86 = scmp.eq.s32.totalorder %s24, 0
      %p87 = por %p85, %p86
      %p88 = scmp.ne.s32.totalorder %s76, %s77
      %p89 = scmp.eq.s32.totalorder %s25, 1
      %p90 = por %p88, %p89
      %p92 = scmp.ne.s32.totalorder %s77, %s91
      %p93 = scmp.eq.s32.totalorder %s25, 0
      %p94 = por %p92, %p93
      %s96 = sadd.s32 %s95, 1
      %p99 = scmp.eq.s32.totalorder %s19, 1
      %p100 = scmp.ne.s32.totalorder %s95, %s97
      %p101 = scmp.eq.s32.totalorder %s19, 0
      %p102 = por %p100, %p101
      %p103 = scmp.ne.s32.totalorder %s95, %s97
      %p104 = scmp.eq.s32.totalorder %s24, 1
      %p105 = por %p103, %p104
      %p106 = scmp.ne.s32.totalorder %s97, %s98
      %p107 = scmp.eq.s32.totalorder %s24, 0
      %p108 = por %p106, %p107
      %p109 = scmp.ne.s32.totalorder %s97, %s98
      %p110 = scmp.eq.s32.totalorder %s25, 1
      %p111 = por %p109, %p110
      %p113 = scmp.ne.s32.totalorder %s98, %s112
      %p114 = scmp.eq.s32.totalorder %s25, 0
      %p115 = por %p113, %p114
      %s117 = sadd.s32 %s116, 1
      %p120 = scmp.eq.s32.totalorder %s19, 1
      %p121 = scmp.ne.s32.totalorder %s116, %s118
      %p122 = scmp.eq.s32.totalorder %s19, 0
      %p123 = por %p121, %p122
      %p124 = scmp.ne.s32.totalorder %s116, %s118
      %p125 = scmp.eq.s32.totalorder %s24, 1
      %p126 = por %p124, %p125
      %p127 = scmp.ne.s32.totalorder %s118, %s119
      %p128 = scmp.eq.s32.totalorder %s24, 0
      %p129 = por %p127, %p128
      %p130 = scmp.ne.s32.totalorder %s118, %s119
      %p131 = scmp.eq.s32.totalorder %s25, 1
      %p132 = por %p130, %p131
      %p134 = scmp.ne.s32.totalorder %s119, %s133
      %p135 = scmp.eq.s32.totalorder %s25, 0
      %p136 = por %p134, %p135
      %s138 = sadd.s32 %s137, 1
      %p141 = scmp.eq.s32.totalorder %s19, 1
      %p142 = scmp.ne.s32.totalorder %s137, %s139
      %p143 = scmp.eq.s32.totalorder %s19, 0
      %p144 = por %p142, %p143
      %p145 = scmp.ne.s32.totalorder %s137, %s139
      %p146 = scmp.eq.s32.totalorder %s24, 1
      %p147 = por %p145, %p146
      %p148 = scmp.ne.s32.totalorder %s139, %s140
      %p149 = scmp.eq.s32.totalorder %s24, 0
      %p150 = por %p148, %p149
      %p151 = scmp.ne.s32.totalorder %s139, %s140
      %p152 = scmp.eq.s32.totalorder %s25, 1
      %p153 = por %p151, %p152
      %p155 = scmp.ne.s32.totalorder %s140, %s154
      %p156 = scmp.eq.s32.totalorder %s25, 0
      %p157 = por %p155, %p156
      %s159 = sadd.s32 %s158, 1
      %p162 = scmp.eq.s32.totalorder %s19, 1
      %p163 = scmp.ne.s32.totalorder %s158, %s160
      %p164 = scmp.eq.s32.totalorder %s19, 0
      %p165 = por %p163, %p164
      %p166 = scmp.ne.s32.totalorder %s158, %s160
      %p167 = scmp.eq.s32.totalorder %s24, 1
      %p168 = por %p166, %p167
      %p169 = scmp.ne.s32.totalorder %s160, %s161
      %p170 = scmp.eq.s32.totalorder %s24, 0
      %p171 = por %p169, %p170
      %p172 = scmp.ne.s32.totalorder %s160, %s161
      %p173 = scmp.eq.s32.totalorder %s25, 1
      %p174 = por %p172, %p173
      %p176 = scmp.ne.s32.totalorder %s161, %s175
      %p177 = scmp.eq.s32.totalorder %s25, 0
      %p178 = por %p176, %p177
      %s180 = sadd.s32 %s179, 1
      %p183 = scmp.eq.s32.totalorder %s19, 1
      %p184 = scmp.ne.s32.totalorder %s179, %s181
      %p185 = scmp.eq.s32.totalorder %s19, 0
      %p186 = por %p184, %p185
      %p187 = scmp.ne.s32.totalorder %s179, %s181
      %p188 = scmp.eq.s32.totalorder %s24, 1
      %p189 = por %p187, %p188
      %p190 = scmp.ne.s32.totalorder %s181, %s182
      %p191 = scmp.eq.s32.totalorder %s24, 0
      %p192 = por %p190, %p191
      %p193 = scmp.ne.s32.totalorder %s181, %s182
      %p194 = scmp.eq.s32.totalorder %s25, 1
      %p195 = por %p193, %p194
      %p197 = scmp.ne.s32.totalorder %s182, %s196
      %p198 = scmp.eq.s32.totalorder %s25, 0
      %p199 = por %p197, %p198
      %s201 = sadd.s32 %s200, 1
      %p204 = scmp.eq.s32.totalorder %s19, 1
      %p205 = scmp.ne.s32.totalorder %s200, %s202
      %p206 = scmp.eq.s32.totalorder %s19, 0
      %p207 = por %p205, %p206
      %p208 = scmp.ne.s32.totalorder %s200, %s202
      %p209 = scmp.eq.s32.totalorder %s24, 1
      %p210 = por %p208, %p209
      %p211 = scmp.ne.s32.totalorder %s202, %s203
      %p212 = scmp.eq.s32.totalorder %s24, 0
      %p213 = por %p211, %p212
      %p214 = scmp.ne.s32.totalorder %s202, %s203
      %p215 = scmp.eq.s32.totalorder %s25, 1
      %p216 = por %p214, %p215
      %p218 = scmp.ne.s32.totalorder %s203, %s217
      %p219 = scmp.eq.s32.totalorder %s25, 0
      %p220 = por %p218, %p219
      %s221 = ssub.s32 %s19, %s26
      %p222 = scmp.eq.s32.totalorder %s221, 0
      %s224 = sadd.s32 %s223, 1
      %s225 = scalar_select %p222, %s223, %s224
      %p228 = pneg %p222
      %p229 = scmp.eq.s32.totalorder %s19, 1
      %p230 = por %p228, %p229
      %p231 = scmp.ne.s32.totalorder %s223, %s226
      %p232 = scmp.eq.s32.totalorder %s19, 0
      %p233 = por %p231, %p232
      %p234 = scmp.ne.s32.totalorder %s223, %s226
      %p235 = scmp.eq.s32.totalorder %s24, 1
      %p236 = por %p234, %p235
      %p237 = scmp.ne.s32.totalorder %s226, %s227
      %p238 = scmp.eq.s32.totalorder %s24, 0
      %p239 = por %p237, %p238
      %p240 = scmp.ne.s32.totalorder %s226, %s227
      %p241 = scmp.eq.s32.totalorder %s25, 1
      %p242 = por %p240, %p241
      %p244 = scmp.ne.s32.totalorder %s227, %s243
      %p245 = scmp.eq.s32.totalorder %s25, 0
      %p246 = por %p244, %p245
      %p247 = scmp.le.s32.totalorder 1, %s19
      %p248 = scmp.lt.s32.totalorder %s19, 3
      %p249 = pnand %p247, %p248
      %p250 = pneg %p249
      // Predicated region
      $region9: #{tpu_custom_call.1} parent=5 // pred_check
        _
      $region10: #{tpu_custom_call.1} parent=5 // pred_check_branch
        %252 = sbr.rel (%p249) target = $region12
      $region11: #{tpu_custom_call.1} parent=5 // pred_region
        %s253 = ssub.s32 %s19, 1
        // Predicated region
        $region13: #{tpu_custom_call.1} parent=11 // pred_check
          %p254 = pneg %p40
        $region14: #{tpu_custom_call.1} parent=11 // pred_check_branch
          %256 = sbr.rel (%p254) target = $region16
        $region15: #{tpu_custom_call.1} parent=11 // pred_region
          %258 = vsyncadd [#allocation4], 0
          %s260 = sshll.u32 %s0, 4
          %s261 = int_to_ptr.vmem [resolvable:$true] %s260
          %263 = dma.vmem_to_smem %s261, 16, [#allocation2], [#allocation4]
        $region16: #{tpu_custom_call.1} parent=11 // pred_fallthru
          _
        // Predicated region
        $region17: #{tpu_custom_call.1} parent=11 // pred_check
          %p264 = pneg %p87
        $region18: #{tpu_custom_call.1} parent=11 // pred_check_branch
          %266 = sbr.rel (%p264) target = $region20
        $region19: #{tpu_custom_call.1} parent=11 // pred_region
          _
        $region20: #{tpu_custom_call.1} parent=11 // pred_fallthru
          _
        // Predicated region
        $region21: #{tpu_custom_call.1} parent=11 // pred_check
          %p267 = pneg %p108
        $region22: #{tpu_custom_call.1} parent=11 // pred_check_branch
          %269 = sbr.rel (%p267) target = $region24
        $region23: #{tpu_custom_call.1} parent=11 // pred_region
          _
        $region24: #{tpu_custom_call.1} parent=11 // pred_fallthru
          _
        // Predicated region
        $region25: #{tpu_custom_call.1} parent=11 // pred_check
          %p270 = pneg %p129
        $region26: #{tpu_custom_call.1} parent=11 // pred_check_branch
          %272 = sbr.rel (%p270) target = $region28
        $region27: #{tpu_custom_call.1} parent=11 // pred_region
          _
        $region28: #{tpu_custom_call.1} parent=11 // pred_fallthru
          _
        // Predicated region
        $region29: #{tpu_custom_call.1} parent=11 // pred_check
          %p273 = pneg %p150
        $region30: #{tpu_custom_call.1} parent=11 // pred_check_branch
          %275 = sbr.rel (%p273) target = $region32
        $region31: #{tpu_custom_call.1} parent=11 // pred_region
          _
        $region32: #{tpu_custom_call.1} parent=11 // pred_fallthru
          _
        // Predicated region
        $region33: #{tpu_custom_call.1} parent=11 // pred_check
          %p276 = pneg %p171
        $region34: #{tpu_custom_call.1} parent=11 // pred_check_branch
          %278 = sbr.rel (%p276) target = $region36
        $region35: #{tpu_custom_call.1} parent=11 // pred_region
          _
        $region36: #{tpu_custom_call.1} parent=11 // pred_fallthru
          _
        // Predicated region
        $region37: #{tpu_custom_call.1} parent=11 // pred_check
          %p279 = pneg %p192
        $region38: #{tpu_custom_call.1} parent=11 // pred_check_branch
          %281 = sbr.rel (%p279) target = $region40
        $region39: #{tpu_custom_call.1} parent=11 // pred_region
          _
        $region40: #{tpu_custom_call.1} parent=11 // pred_fallthru
          _
        // Predicated region
        $region41: #{tpu_custom_call.1} parent=11 // pred_check
          %p282 = pneg %p213
        $region42: #{tpu_custom_call.1} parent=11 // pred_check_branch
          %284 = sbr.rel (%p282) target = $region44
        $region43: #{tpu_custom_call.1} parent=11 // pred_region
          _
        $region44: #{tpu_custom_call.1} parent=11 // pred_fallthru
          _
      $region12: #{tpu_custom_call.1} parent=5 // pred_fallthru
        _
      %p285 = scmp.lt.s32.totalorder %s19, 2
      // Predicated region
      $region45: #{tpu_custom_call.1} parent=5 // pred_check
        %p286 = pneg %p285
      $region46: #{tpu_custom_call.1} parent=5 // pred_check_branch
        %288 = sbr.rel (%p286) target = $region48
      $region47: #{tpu_custom_call.1} parent=5 // pred_region
        // Predicated region
        $region49: #{tpu_custom_call.1} parent=47 // pred_check
          %p289 = pneg %p60
        $region50: #{tpu_custom_call.1} parent=47 // pred_check_branch
          %291 = sbr.rel (%p289) target = $region52
        $region51: #{tpu_custom_call.1} parent=47 // pred_region
          %p292 = scmp.lt.s32.totalorder %s19, 1
          %s293 = scalar_select %p292, %s19, 1
          %s294 = smul.addr %s293, 8
          %s295 = scalar_lea.vmem %s1, %s294
        $region52: #{tpu_custom_call.1} parent=47 // pred_fallthru
          _
      $region48: #{tpu_custom_call.1} parent=5 // pred_fallthru
        _
      %p296 = scmp.le.s32.totalorder 1, %s19
      %p297 = scmp.lt.s32.totalorder %s19, 3
      %p298 = pnand %p296, %p297
      %p299 = pneg %p298
      // Predicated region
      $region53: #{tpu_custom_call.1} parent=5 // pred_check
        _
      $region54: #{tpu_custom_call.1} parent=5 // pred_check_branch
        %301 = sbr.rel (%p298) target = $region56
      $region55: #{tpu_custom_call.1} parent=5 // pred_region
        %s302 = ssub.s32 %s19, 1
        // Predicated region
        $region57: #{tpu_custom_call.1} parent=55 // pred_check
          %p303 = pneg %p40
        $region58: #{tpu_custom_call.1} parent=55 // pred_check_branch
          %305 = sbr.rel (%p303) target = $region60
        $region59: #{tpu_custom_call.1} parent=55 // pred_region
          %307 = dma.done [#allocation4], 16
        $region60: #{tpu_custom_call.1} parent=55 // pred_fallthru
          _
        %308 = sfence
        %p309 = pneg %p40
        %p310 = pneg %p37
        %p311 = scmp.lt.s32.totalorder %s24, 1
        %s312 = scalar_select %p311, %s24, 1
        %s313 = smul.addr %s312, 8
        %s314 = scalar_lea.vmem %s1, %s313
        %p315 = pneg %p66
        %p316 = pneg %p63
        %p317 = pneg %p87
        %p318 = pneg %p84
        %p319 = pneg %p108
        %p320 = pneg %p105
        %p321 = pneg %p129
        %p322 = pneg %p126
        %p323 = pneg %p150
        %p324 = pneg %p147
        %p325 = pneg %p171
        %p326 = pneg %p168
        %p327 = pneg %p192
        %p328 = pneg %p189
        %p329 = pneg %p213
        %p330 = pneg %p210
        %p331 = pneg %p239
        %p332 = pneg %p236
        %s333 = sand.u32 %s226, 1
        %s334 = scalar_lea.sflag [#allocation3], %s333
        %s335 = sand.u32 %s226, 1
        %s336 = smul.addr %s335, 16
        %s337 = scalar_lea.vmem [#allocation5], %s336
        %p338 = scmp.lt.s32.totalorder %s24, 1
        %s339 = scalar_select %p338, %s24, 1
        %s340 = smul.addr %s339, 8
        %s341 = scalar_lea.vmem %s1, %s340
        %s343 = sld [smem:[#allocation2]]
        %s344 = sld [smem:[#allocation2 + $0x1]]
        %v345 = vld [vmem:[%s2] sm:$0xf]
        %v346 = vld [vmem:[%s2 + $0x4] sm:$0xf]
        %v347 = vld [vmem:[%s2 + $0x8] sm:$0xf]
        %v348 = vld [vmem:[%s2 + $0xc] sm:$0xf]
        %v349 = vld [vmem:[%s8] sm:$0xf]
        %v350 = vld [vmem:[%s8 + $0x4] sm:$0xf]
        %v351 = vld [vmem:[%s5] sm:$0xff]
        %v352 = vld [vmem:[%s5 + $0x8] sm:$0xff]
        %v353 = vld [vmem:[%s5 + $0x10] sm:$0xff]
        %v354 = vld [vmem:[%s5 + $0x18] sm:$0xff]
        %v355 = vld [vmem:[%s3] sm:$0xff]
        %v356 = vld [vmem:[%s3 + $0x8] sm:$0xff]
        %v357 = vld [vmem:[%s3 + $0x10] sm:$0xff]
        %v358 = vld [vmem:[%s3 + $0x18] sm:$0xff]
        %v359 = vld [vmem:[%s4] sm:$0xff]
        %v360 = vld [vmem:[%s4 + $0x8] sm:$0xff]
        %v361 = vld [vmem:[%s4 + $0x10] sm:$0xff]
        %v362 = vld [vmem:[%s4 + $0x18] sm:$0xff]
        %v363 = vld [vmem:[%s6] sm:$0xff]
        %v364 = vld [vmem:[%s6 + $0x8] sm:$0xff]
        %v365 = vld [vmem:[%s6 + $0x10] sm:$0xff]
        %v366 = vld [vmem:[%s6 + $0x18] sm:$0xff]
        %v367 = vld [vmem:[%s7] sm:$0xff]
        %v368 = vld [vmem:[%s7 + $0x8] sm:$0xff]
        %v369 = vld [vmem:[%s7 + $0x10] sm:$0xff]
        %v370 = vld [vmem:[%s7 + $0x18] sm:$0xff]
        %v371 = vlaneseq
        %v372 = vand.u32 %v371, 127
        %vm373 = vcmp.lt.s32.totalorder %v372, 16
        %v374 = vsel %vm373, 1, 0
        %v375 = vcvt.s32.f32 %v374
        %v376 = vld [vmem:[%s341] sm:$0xff]
        %v377 = vpack.c.bf16 %v376, %v376
        %v382 = vunpack.c.l.b16 %v345
        %v383 = vunpack.c.l.b16 %v346
        %v384 = vunpack.c.l.b16 %v347
        %v385 = vunpack.c.l.b16 %v348
        %v386 = vpack.c.b16 %v383, %v382
        %v387 = vpack.c.b16 %v385, %v384
        %vm388 = vcmask 64512
        %v390 = vsel %vm388, %v386, 0
        %v393 = vsel %vm388, %v387, 0
        %vm395 = vcmask 1043456
        %v397 = vsel %vm395, %v377, 0
        %399 = vmatpush.bf16.msra.mxu0 0
        %400 = vmatpush.bf16.msra.mxu0 0
        %401 = vmatpush.bf16.msra.mxu0 0
        %402 = vmatpush.bf16.msra.mxu0 0
        %403 = vmatpush.bf16.msra.mxu0 0
        %404 = vmatpush.bf16.msra.mxu0 0
        %405 = vmatpush.bf16.msra.mxu0 0
        %406 = vmatpush.bf16.msra.mxu0 %v397
        %407 = vmatmul.bf16.gmra.mxu0 %v390
        %v408 = vpop.f32.mrf.mxu0
        %v409 = vadd.f32 0.0, %v408
        %v410 = vpop.f32.mrf.mxu0
        %v411 = vadd.f32 0.0, %v410
        %412 = vmatmul.bf16.gmra.mxu0 %v393
        %v413 = vpop.f32.mrf.mxu0
        %v414 = vadd.f32 0.0, %v413
        %v415 = vpop.f32.mrf.mxu0
        %v416 = vadd.f32 0.0, %v415
        %417 = vdwg.mxu0
        %vm418 = vcmp.gt.f32.partialorder %v409, 0.0
        %vm419 = vcmp.gt.f32.partialorder %v411, 0.0
        %vm420 = vcmp.gt.f32.partialorder %v414, 0.0
        %vm421 = vcmp.gt.f32.partialorder %v416, 0.0
        %v422 = vstv %s343
        %v423 = vmul.f32 %v422, %v409
        %v424 = vmul.f32 %v422, %v411
        %v425 = vmul.f32 %v422, %v414
        %v426 = vmul.f32 %v422, %v416
        %v427 = vsel %vm418, %v409, %v423
        %v428 = vsel %vm419, %v411, %v424
        %v429 = vsel %vm420, %v414, %v425
        %v430 = vsel %vm421, %v416, %v426
        %v431 = vadd.f32 %v427, %v428
        %v432 = vadd.f32 %v431, %v429
        %v433 = vadd.f32 %v432, %v430
        %434 = vadd.xlane.f32.xlu0 %v433
        %v435 = vpop.xlane.xlu0 %434
        %v436 = vrot.slane %v435, 4
        %v437 = vadd.f32 %v435, %v436
        %v438 = vrot.slane %v437, 2
        %v439 = vadd.f32 %v437, %v438
        %v440 = vrot.slane %v439, 1
        %v441 = vadd.f32 %v439, %v440
        %s442 = vtos %v441
        %s443 = smul.f32 %s442, 0.001953125
        %v444 = vmul.f32 %v427, %v427
        %v445 = vmul.f32 %v428, %v428
        %v446 = vmul.f32 %v429, %v429
        %v447 = vmul.f32 %v430, %v430
        %v448 = vadd.f32 %v444, %v445
        %v449 = vadd.f32 %v448, %v446
        %v450 = vadd.f32 %v449, %v447
        %451 = vadd.xlane.f32.xlu0 %v450
        %v452 = vpop.xlane.xlu0 %451
        %v453 = vrot.slane %v452, 4
        %v454 = vadd.f32 %v452, %v453
        %v455 = vrot.slane %v454, 2
        %v456 = vadd.f32 %v454, %v455
        %v457 = vrot.slane %v456, 1
        %v458 = vadd.f32 %v456, %v457
        %s459 = vtos %v458
        %s460 = smul.f32 %s459, 0.001953125
        %s461 = smul.f32 %s443, %s443
        %s462 = ssub.f32 %s460, %s461
        %s463 = smax.f32 %s462, 0.0
        %s464 = sadd.f32 %s463, 1e-08
        %v465 = vstv %s464
        %v466 = vrsqrt.pop %v465
        %v467 = vmul.f32 %v466, %v465
        %v468 = vmul.f32 %v467, %v466
        %v469 = vmul.f32 0.5, %v468
        %v470 = vsub.f32 1.5, %v469
        %v471 = vmul.f32 %v466, %v470
        %vm472 = vweird.f32 %v465
        %vm473 = vweird.f32 %v466
        %vm474 = vmor %vm472, %vm473
        %v475 = vsel %vm474, %v466, %v471
        %s476 = vtos %v475
        %v477 = vstv %s476
        %v478 = vmul.f32 %v477, %v355
        %v479 = vmul.f32 %v477, %v356
        %v480 = vmul.f32 %v477, %v357
        %v481 = vmul.f32 %v477, %v358
        %483 = vset.pattern.permute.xlu0 0
        %484 = vperm.xlu0 %483, %v478
        %v485 = vpop.permute.xlu0 %484
        %488 = vset.pattern.permute.xlu0 0
        %489 = vperm.xlu0 %488, %v479
        %v490 = vpop.permute.xlu0 %489
        %493 = vset.pattern.permute.xlu0 0
        %494 = vperm.xlu0 %493, %v480
        %v495 = vpop.permute.xlu0 %494
        %498 = vset.pattern.permute.xlu0 0
        %499 = vperm.xlu0 %498, %v481
        %v500 = vpop.permute.xlu0 %499
        %v502 = vmul.f32 %v427, %v485
        %v503 = vmul.f32 %v428, %v490
        %v504 = vmul.f32 %v429, %v495
        %v505 = vmul.f32 %v430, %v500
        %v506 = vstv %s443
        %v507 = vmul.f32 %v506, %v478
        %v508 = vmul.f32 %v506, %v479
        %v509 = vmul.f32 %v506, %v480
        %v510 = vmul.f32 %v506, %v481
        %v511 = vsub.f32 %v359, %v507
        %v512 = vsub.f32 %v360, %v508
        %v513 = vsub.f32 %v361, %v509
        %v514 = vsub.f32 %v362, %v510
        %516 = vset.pattern.permute.xlu0 0
        %517 = vperm.xlu0 %516, %v511
        %v518 = vpop.permute.xlu0 %517
        %521 = vset.pattern.permute.xlu0 0
        %522 = vperm.xlu0 %521, %v512
        %v523 = vpop.permute.xlu0 %522
        %526 = vset.pattern.permute.xlu0 0
        %527 = vperm.xlu0 %526, %v513
        %v528 = vpop.permute.xlu0 %527
        %531 = vset.pattern.permute.xlu0 0
        %532 = vperm.xlu0 %531, %v514
        %v533 = vpop.permute.xlu0 %532
        %v535 = vadd.f32 %v502, %v518
        %v536 = vadd.f32 %v503, %v523
        %v537 = vadd.f32 %v504, %v528
        %v538 = vadd.f32 %v505, %v533
        %v539 = vmul.f32 %v535, %v375
        %v540 = vmul.f32 %v536, %v375
        %v541 = vmul.f32 %v537, %v375
        %v542 = vmul.f32 %v538, %v375
        %543 = vrot.lane.b32.xlu0 %v539, 2
        %v544 = vpop.permute.xlu0 %543
        %545 = vrot.lane.b32.xlu0 %v540, 2
        %v546 = vpop.permute.xlu0 %545
        %547 = vrot.lane.b32.xlu0 %v541, 2
        %v548 = vpop.permute.xlu0 %547
        %549 = vrot.lane.b32.xlu0 %v542, 2
        %v550 = vpop.permute.xlu0 %549
        %552 = vset.pattern.permute.xlu0 0
        %553 = vperm.xlu0 %552, %v351
        %v554 = vpop.permute.xlu0 %553
        %557 = vset.pattern.permute.xlu0 0
        %558 = vperm.xlu0 %557, %v352
        %v559 = vpop.permute.xlu0 %558
        %562 = vset.pattern.permute.xlu0 0
        %563 = vperm.xlu0 %562, %v353
        %v564 = vpop.permute.xlu0 %563
        %567 = vset.pattern.permute.xlu0 0
        %568 = vperm.xlu0 %567, %v354
        %v569 = vpop.permute.xlu0 %568
        %v571 = vmul.f32 %v554, %v544
        %v572 = vmul.f32 %v559, %v546
        %v573 = vmul.f32 %v564, %v548
        %v574 = vmul.f32 %v569, %v550
        %575 = vset.pattern.permute.xlu0 1
        %576 = vperm.xlu0 %575, %v351
        %v577 = vpop.permute.xlu0 %576
        %579 = vset.pattern.permute.xlu0 1
        %580 = vperm.xlu0 %579, %v352
        %v581 = vpop.permute.xlu0 %580
        %583 = vset.pattern.permute.xlu0 1
        %584 = vperm.xlu0 %583, %v353
        %v585 = vpop.permute.xlu0 %584
        %587 = vset.pattern.permute.xlu0 1
        %588 = vperm.xlu0 %587, %v354
        %v589 = vpop.permute.xlu0 %588
        %v591 = vmul.f32 %v577, %v539
        %v592 = vmul.f32 %v581, %v540
        %v593 = vmul.f32 %v585, %v541
        %v594 = vmul.f32 %v589, %v542
        %v595 = vadd.f32 %v571, %v591
        %v596 = vadd.f32 %v572, %v592
        %v597 = vadd.f32 %v573, %v593
        %v598 = vadd.f32 %v574, %v594
        %599 = vrot.lane.b32.xlu0 %v539, 126
        %v600 = vpop.permute.xlu0 %599
        %601 = vrot.lane.b32.xlu0 %v540, 126
        %v602 = vpop.permute.xlu0 %601
        %603 = vrot.lane.b32.xlu0 %v541, 126
        %v604 = vpop.permute.xlu0 %603
        %605 = vrot.lane.b32.xlu0 %v542, 126
        %v606 = vpop.permute.xlu0 %605
        %607 = vset.pattern.permute.xlu0 2
        %608 = vperm.xlu0 %607, %v351
        %v609 = vpop.permute.xlu0 %608
        %611 = vset.pattern.permute.xlu0 2
        %612 = vperm.xlu0 %611, %v352
        %v613 = vpop.permute.xlu0 %612
        %615 = vset.pattern.permute.xlu0 2
        %616 = vperm.xlu0 %615, %v353
        %v617 = vpop.permute.xlu0 %616
        %619 = vset.pattern.permute.xlu0 2
        %620 = vperm.xlu0 %619, %v354
        %v621 = vpop.permute.xlu0 %620
        %v623 = vmul.f32 %v609, %v600
        %v624 = vmul.f32 %v613, %v602
        %v625 = vmul.f32 %v617, %v604
        %v626 = vmul.f32 %v621, %v606
        %v627 = vadd.f32 %v595, %v623
        %v628 = vadd.f32 %v596, %v624
        %v629 = vadd.f32 %v597, %v625
        %v630 = vadd.f32 %v598, %v626
        %vm631 = vcmp.gt.f32.partialorder %v627, 0.0
        %vm632 = vcmp.gt.f32.partialorder %v628, 0.0
        %vm633 = vcmp.gt.f32.partialorder %v629, 0.0
        %vm634 = vcmp.gt.f32.partialorder %v630, 0.0
        %v635 = vstv %s344
        %v636 = vmul.f32 %v635, %v627
        %v637 = vmul.f32 %v635, %v628
        %v638 = vmul.f32 %v635, %v629
        %v639 = vmul.f32 %v635, %v630
        %v640 = vsel %vm631, %v627, %v636
        %v641 = vsel %vm632, %v628, %v637
        %v642 = vsel %vm633, %v629, %v638
        %v643 = vsel %vm634, %v630, %v639
        %v644 = vmul.f32 %v640, %v375
        %v645 = vmul.f32 %v641, %v375
        %v646 = vmul.f32 %v642, %v375
        %v647 = vmul.f32 %v643, %v375
        %v648 = vadd.f32 %v644, %v645
        %v649 = vadd.f32 %v648, %v646
        %v650 = vadd.f32 %v649, %v647
        %651 = vadd.xlane.f32.xlu0 %v650
        %v652 = vpop.xlane.xlu0 %651
        %v653 = vrot.slane %v652, 4
        %v654 = vadd.f32 %v652, %v653
        %v655 = vrot.slane %v654, 2
        %v656 = vadd.f32 %v654, %v655
        %v657 = vrot.slane %v656, 1
        %v658 = vadd.f32 %v656, %v657
        %s659 = vtos %v658
        %s660 = smul.f32 %s659, 0.001953125
        %v661 = vmul.f32 %v644, %v640
        %v662 = vmul.f32 %v645, %v641
        %v663 = vmul.f32 %v646, %v642
        %v664 = vmul.f32 %v647, %v643
        %v665 = vadd.f32 %v661, %v662
        %v666 = vadd.f32 %v665, %v663
        %v667 = vadd.f32 %v666, %v664
        %668 = vadd.xlane.f32.xlu0 %v667
        %v669 = vpop.xlane.xlu0 %668
        %v670 = vrot.slane %v669, 4
        %v671 = vadd.f32 %v669, %v670
        %v672 = vrot.slane %v671, 2
        %v673 = vadd.f32 %v671, %v672
        %v674 = vrot.slane %v673, 1
        %v675 = vadd.f32 %v673, %v674
        %s676 = vtos %v675
        %s677 = smul.f32 %s676, 0.001953125
        %s678 = smul.f32 %s660, %s660
        %s679 = ssub.f32 %s677, %s678
        %s680 = smax.f32 %s679, 0.0
        %s681 = sadd.f32 %s680, 1e-08
        %v682 = vstv %s681
        %v683 = vrsqrt.pop %v682
        %v684 = vmul.f32 %v683, %v682
        %v685 = vmul.f32 %v684, %v683
        %v686 = vmul.f32 0.5, %v685
        %v687 = vsub.f32 1.5, %v686
        %v688 = vmul.f32 %v683, %v687
        %vm689 = vweird.f32 %v682
        %vm690 = vweird.f32 %v683
        %vm691 = vmor %vm689, %vm690
        %v692 = vsel %vm691, %v683, %v688
        %s693 = vtos %v692
        %v694 = vstv %s693
        %v695 = vmul.f32 %v694, %v363
        %v696 = vmul.f32 %v694, %v364
        %v697 = vmul.f32 %v694, %v365
        %v698 = vmul.f32 %v694, %v366
        %700 = vset.pattern.permute.xlu0 0
        %701 = vperm.xlu0 %700, %v695
        %v702 = vpop.permute.xlu0 %701
        %705 = vset.pattern.permute.xlu0 0
        %706 = vperm.xlu0 %705, %v696
        %v707 = vpop.permute.xlu0 %706
        %710 = vset.pattern.permute.xlu0 0
        %711 = vperm.xlu0 %710, %v697
        %v712 = vpop.permute.xlu0 %711
        %715 = vset.pattern.permute.xlu0 0
        %716 = vperm.xlu0 %715, %v698
        %v717 = vpop.permute.xlu0 %716
        %v719 = vmul.f32 %v640, %v702
        %v720 = vmul.f32 %v641, %v707
        %v721 = vmul.f32 %v642, %v712
        %v722 = vmul.f32 %v643, %v717
        %v723 = vstv %s660
        %v724 = vmul.f32 %v723, %v695
        %v725 = vmul.f32 %v723, %v696
        %v726 = vmul.f32 %v723, %v697
        %v727 = vmul.f32 %v723, %v698
        %v728 = vsub.f32 %v367, %v724
        %v729 = vsub.f32 %v368, %v725
        %v730 = vsub.f32 %v369, %v726
        %v731 = vsub.f32 %v370, %v727
        %733 = vset.pattern.permute.xlu0 0
        %734 = vperm.xlu0 %733, %v728
        %v735 = vpop.permute.xlu0 %734
        %738 = vset.pattern.permute.xlu0 0
        %739 = vperm.xlu0 %738, %v729
        %v740 = vpop.permute.xlu0 %739
        %743 = vset.pattern.permute.xlu0 0
        %744 = vperm.xlu0 %743, %v730
        %v745 = vpop.permute.xlu0 %744
        %748 = vset.pattern.permute.xlu0 0
        %749 = vperm.xlu0 %748, %v731
        %v750 = vpop.permute.xlu0 %749
        %v752 = vadd.f32 %v719, %v735
        %v753 = vadd.f32 %v720, %v740
        %v754 = vadd.f32 %v721, %v745
        %v755 = vadd.f32 %v722, %v750
        %v756 = vpack.c.bf16 %v753, %v752
        %v757 = vpack.c.bf16 %v755, %v754
        %v760 = vunpack.c.l.b16 %v349
        %v761 = vunpack.c.l.b16 %v350
        %v762 = vpack.c.b16 %v761, %v760
        %vm763 = vcmask 261120
        %v765 = vsel %vm763, %v762, 0
        %767 = vmatpush.bf16.msra.mxu0 0
        %768 = vmatpush.bf16.msra.mxu0 0
        %769 = vmatpush.bf16.msra.mxu0 0
        %770 = vmatpush.bf16.msra.mxu0 0
        %771 = vmatpush.bf16.msra.mxu0 0
        %772 = vmatpush.bf16.msra.mxu0 0
        %773 = vmatpush.bf16.msra.mxu0 %v757
        %774 = vmatpush.bf16.msra.mxu0 %v756
        %775 = vmatmul.bf16.gmra.mxu0 %v765
        %v776 = vpop.f32.mrf.mxu0
        %v777 = vadd.f32 0.0, %v776
        %v778 = vpop.f32.mrf.mxu0
        %v779 = vadd.f32 0.0, %v778
        %780 = vdwg.mxu0
        %v781 = vadd.f32 %v777, %v376
        %782 = vst [vmem:[%s337] sm:$0xff] %v781
        %783 = vst [vmem:[%s337 + $0x8] sm:$0xff] %v779
        %s784 = sand.u32 %s226, 1
        %s785 = scalar_lea.sflag [#allocation3], %s784
        %s786 = sand.u32 %s226, 1
        %s787 = smul.addr %s786, 16
        %s788 = scalar_lea.vmem [#allocation5], %s787
        // Predicated region
        $region61: #{tpu_custom_call.1} parent=55 // pred_check
          %p789 = pneg %p236
        $region62: #{tpu_custom_call.1} parent=55 // pred_check_branch
          %791 = sbr.rel (%p789) target = $region64
        $region63: #{tpu_custom_call.1} parent=55 // pred_region
          %793 = vsyncadd %s785, 0
          %s794 = smul.addr %s24, 2
          %s795 = smul.addr %s794, 8
          %s796 = scalar_lea.hbm %s9, %s795
          %s797 = sshll.u32 %s788, 4
          %s798 = int_to_ptr.vmem [resolvable:$true] %s797
          %s799 = sshll.u32 %s796, 4
          %s800 = int_to_ptr.hbm [resolvable:$true] %s799
          %805 = dma.vmem_to_hbm [thread:$0]  %s798, 256, %s800, %s785, 128, 128, 8
        $region64: #{tpu_custom_call.1} parent=55 // pred_fallthru
          _
      $region56: #{tpu_custom_call.1} parent=5 // pred_fallthru
        _
      %p806 = scmp.le.s32.totalorder 2, %s19
      // Predicated region
      $region65: #{tpu_custom_call.1} parent=5 // pred_check
        %p807 = pneg %p806
      $region66: #{tpu_custom_call.1} parent=5 // pred_check_branch
        %809 = sbr.rel (%p807) target = $region68
      $region67: #{tpu_custom_call.1} parent=5 // pred_region
        %s810 = ssub.s32 %s19, 2
        // Predicated region
        $region69: #{tpu_custom_call.1} parent=67 // pred_check
          %p811 = pneg %p242
        $region70: #{tpu_custom_call.1} parent=67 // pred_check_branch
          %813 = sbr.rel (%p811) target = $region72
        $region71: #{tpu_custom_call.1} parent=67 // pred_region
          %s814 = sand.u32 %s227, 1
          %s815 = scalar_lea.sflag [#allocation3], %s814
          %s816 = sand.u32 %s227, 1
          %s817 = smul.addr %s816, 16
          %s818 = scalar_lea.vmem [#allocation5], %s817
          %820 = dma.done %s815, 256
        $region72: #{tpu_custom_call.1} parent=67 // pred_fallthru
          _
      $region68: #{tpu_custom_call.1} parent=5 // pred_fallthru
        _
    $region6: #{tpu_custom_call.1} parent=1 // loop_footer
      %s23 = sadd.s32 1, %s19
    $region7: #{tpu_custom_call.1} parent=1 // loop_footer_branch
      %18 = sbr.rel target = $region3
    $region8: #{tpu_custom_call.1} parent=1 // loop_exit
      _
    %821 = vsyncpa [#allocation3], 1
    %s822 = scalar_lea.sflag [#allocation3], 1
    %823 = vsyncpa %s822, 1
    %824 = vsyncpa [#allocation4], 1
    %s825 = scalar_lea.sflag [#allocation4], 1
    %826 = vsyncpa %s825, 1

</llo_original>
